<compile_context>
chip_gen: v6e
topology: v6e:2x2x1
jax: 0.10.0
libtpu: 0.0.40
codegen_flags: <defaults>
</compile_context>

<pallas_src>
import functools

import jax
import jax.numpy as jnp
from jax.experimental import pallas as pl
from jax.experimental.pallas import tpu as pltpu

EPS = 1e-5
_MIB = 1024 * 1024


# ---------------------------------------------------------------------------
# Generation-aware configuration.
# ---------------------------------------------------------------------------
@functools.lru_cache(maxsize=1)
def _tpu_config():
    """VMEM budgets per TPU generation (v5e/v6e: 128 MiB VMEM, v7x: 64 MiB)."""
    cap = None
    try:
        cap = getattr(pltpu.get_tpu_info(), "vmem_capacity_bytes", None)
    except Exception:   # query unavailable -> conservative (v7x-sized) budgets
        cap = None
    if not cap:
        cap = 64 * _MIB
    big = cap >= 96 * _MIB
    return {
        # f32-equivalent size of `data` below which the single-pass resident
        # kernel is used (everything except 1 read + 1 write stays in VMEM).
        "resident_max_f32_bytes": (16 if big else 8) * _MIB,
        # per-tile (single-buffer) streaming granularity
        "tile_target_bytes": (4 if big else 2) * _MIB,
        # scoped VMEM limits (headroom vs 128 MiB / 64 MiB physical)
        "vmem_limit_resident": (88 if big else 44) * _MIB,
        "vmem_limit_tiled": (64 if big else 36) * _MIB,
    }


def _choose_tile_n(n_rows, n_cols, itemsize, target_bytes):
    """Row-tile size: ~target_bytes per tile, rounded to the dtype's sublane
    packing (8 rows for f32, 16 for bf16, 32 for int8/fp8)."""
    pack = max(8, 32 // max(int(itemsize), 1))
    tile = target_bytes // max(n_cols * int(itemsize), 1)
    tile = max(pack, (tile // pack) * pack)
    if tile >= n_rows:
        return n_rows, 1                      # single full-extent tile
    return tile, -(-n_rows // tile)


def _group_projector(view_c, in_channels, group, cpg):
    """(view_c, group) one-hot channel->group projector (lane l -> l % C)."""
    ch = jnp.arange(view_c, dtype=jnp.int32) % in_channels
    gid = ch // cpg
    p = (gid[:, None] == jnp.arange(group, dtype=jnp.int32)[None, :])
    p = p.astype(jnp.float32)
    return p, p.T


def _fold_affine(s, sq, w, b, p, pt, count):
    """Fold per-channel sum / sumsq into per-group stats and return the fused
    per-channel affine (scale, shift) so that out = x * scale + shift.

    p: (C, group) one-hot projector, pt = p.T.  Two tiny M=1 matmuls replace
    the former O(C^2) in-kernel selector.  Runs once per call (negligible).
    """
    inv_count = 1.0 / (count + EPS)            # eps added to the COUNT (ocnn)
    gs = jnp.dot(s, p, preferred_element_type=jnp.float32)       # (1, group)
    gsq = jnp.dot(sq, p, preferred_element_type=jnp.float32)     # (1, group)
    mean_g = gs * inv_count
    var_g = (gsq - 2.0 * mean_g * gs + count * mean_g * mean_g) * inv_count
    inv_std_g = jax.lax.rsqrt(var_g + EPS)
    scale = jnp.dot(inv_std_g, pt, preferred_element_type=jnp.float32) * w
    shift = b - jnp.dot(mean_g, pt, preferred_element_type=jnp.float32) * scale
    return scale, shift


# ---------------------------------------------------------------------------
# Resident path: single-pass streaming kernel (1 HBM read + 1 HBM write).
# ---------------------------------------------------------------------------
def _resident_kernel(x_ref, w_ref, b_ref, p_ref, pt_ref, o_ref,
                     xbuf, sum_sc, sq_sc, *,
                     n_rows, tile_n, num_tiles, count, has_tail):
    i = pl.program_id(0)

    @pl.when(i == 0)
    def _init():
        sum_sc[...] = jnp.zeros_like(sum_sc)
        sq_sc[...] = jnp.zeros_like(sq_sc)

    x = x_ref[...].astype(jnp.float32)                     # (tile_n, C)

    # Stash the tile in the resident f32 scratch (read back on the last step).
    if num_tiles == 1:
        xbuf[...] = x
    else:
        start = pl.multiple_of(i * tile_n, tile_n)
        xbuf[pl.ds(start, tile_n), :] = x

    def _accum(xv):
        sum_sc[...] += jnp.sum(xv, axis=0, keepdims=True)
        sq_sc[...] += jnp.sum(xv * xv, axis=0, keepdims=True)

    if has_tail:
        # Mask rows past n_rows ONLY on the (partial) last tile -- full tiles
        # pay no extra VPU work.
        @pl.when(i < num_tiles - 1)
        def _full():
            _accum(x)

        @pl.when(i == num_tiles - 1)
        def _tail():
            row = jax.lax.broadcasted_iota(jnp.int32, x.shape, 0) + i * tile_n
            _accum(jnp.where(row < n_rows, x, 0.0))
    else:
        _accum(x)

    @pl.when(i == num_tiles - 1)
    def _finalize():
        scale, shift = _fold_affine(sum_sc[...], sq_sc[...],
                                    w_ref[...], b_ref[...],
                                    p_ref[...], pt_ref[...], count)
        xv = xbuf[pl.ds(0, n_rows), :]
        o_ref[...] = (xv * scale + shift).astype(o_ref.dtype)


def _forward_resident(x, w, b, p, pt, count, tile_target, vmem_limit):
    n_rows, chans = x.shape
    tile_n, num_tiles = _choose_tile_n(
        n_rows, chans, jnp.dtype(x.dtype).itemsize, tile_target)
    has_tail = num_tiles > 1 and n_rows % tile_n != 0
    kernel = functools.partial(
        _resident_kernel, n_rows=n_rows, tile_n=tile_n, num_tiles=num_tiles,
        count=count, has_tail=has_tail)
    return pl.pallas_call(
        kernel,
        out_shape=jax.ShapeDtypeStruct((n_rows, chans), x.dtype),
        grid=(num_tiles,),
        in_specs=[pl.BlockSpec((tile_n, chans), lambda i: (i, 0)),
                  pl.BlockSpec((1, chans), lambda i: (0, 0)),
                  pl.BlockSpec((1, chans), lambda i: (0, 0)),
                  pl.BlockSpec(p.shape, lambda i: (0, 0)),
                  pl.BlockSpec(pt.shape, lambda i: (0, 0))],
        # Full-array output block, written only on the last grid step; a single
        # HBM writeback happens after the grid (standard accumulator pattern).
        out_specs=pl.BlockSpec((n_rows, chans), lambda i: (0, 0)),
        scratch_shapes=[pltpu.VMEM((num_tiles * tile_n, chans), jnp.float32),
                        pltpu.VMEM((1, chans), jnp.float32),
                        pltpu.VMEM((1, chans), jnp.float32)],
        compiler_params=pltpu.CompilerParams(
            dimension_semantics=("arbitrary",),
            vmem_limit_bytes=vmem_limit),
    )(x, w, b, p, pt)


# ---------------------------------------------------------------------------
# Large-data path: pass 1 (stats + fused affine) + pass 2 (normalize).
# ---------------------------------------------------------------------------
def _stats_kernel(x_ref, w_ref, b_ref, p_ref, pt_ref, scale_ref, shift_ref,
                  sum_sc, sq_sc, *, n_rows, tile_n, num_tiles, count, has_tail):
    i = pl.program_id(0)

    @pl.when(i == 0)
    def _init():
        sum_sc[...] = jnp.zeros_like(sum_sc)
        sq_sc[...] = jnp.zeros_like(sq_sc)

    x = x_ref[...].astype(jnp.float32)

    def _accum(xv):
        sum_sc[...] += jnp.sum(xv, axis=0, keepdims=True)
        sq_sc[...] += jnp.sum(xv * xv, axis=0, keepdims=True)

    if has_tail:
        @pl.when(i < num_tiles - 1)
        def _full():
            _accum(x)

        @pl.when(i == num_tiles - 1)
        def _tail():
            row = jax.lax.broadcasted_iota(jnp.int32, x.shape, 0) + i * tile_n
            _accum(jnp.where(row < n_rows, x, 0.0))
    else:
        _accum(x)

    # Emit the fused per-channel affine directly from the last step (no glue
    # kernels / stats round-trip between the two pallas_calls).
    @pl.when(i == num_tiles - 1)
    def _finalize():
        scale, shift = _fold_affine(sum_sc[...], sq_sc[...],
                                    w_ref[...], b_ref[...],
                                    p_ref[...], pt_ref[...], count)
        scale_ref[...] = scale
        shift_ref[...] = shift


def _norm_kernel(x_ref, scale_ref, shift_ref, o_ref):
    # One multiply-add per element.  On a partial last tile the rows past the
    # array end compute garbage, but Pallas clips the out-of-range part of the
    # output block on writeback (do not change the out BlockSpec casually).
    x = x_ref[...].astype(jnp.float32)
    o_ref[...] = (x * scale_ref[...] + shift_ref[...]).astype(o_ref.dtype)


def _forward_two_pass(x, w, b, p, pt, count, tile_target, vmem_limit):
    n_rows, chans = x.shape
    tile_n, num_tiles = _choose_tile_n(
        n_rows, chans, jnp.dtype(x.dtype).itemsize, tile_target)
    has_tail = num_tiles > 1 and n_rows % tile_n != 0

    stats = functools.partial(
        _stats_kernel, n_rows=n_rows, tile_n=tile_n, num_tiles=num_tiles,
        count=count, has_tail=has_tail)
    scale, shift = pl.pallas_call(
        stats,
        out_shape=(jax.ShapeDtypeStruct((1, chans), jnp.float32),
                   jax.ShapeDtypeStruct((1, chans), jnp.float32)),
        grid=(num_tiles,),
        in_specs=[pl.BlockSpec((tile_n, chans), lambda i: (i, 0)),
                  pl.BlockSpec((1, chans), lambda i: (0, 0)),
                  pl.BlockSpec((1, chans), lambda i: (0, 0)),
                  pl.BlockSpec(p.shape, lambda i: (0, 0)),
                  pl.BlockSpec(pt.shape, lambda i: (0, 0))],
        out_specs=(pl.BlockSpec((1, chans), lambda i: (0, 0)),
                   pl.BlockSpec((1, chans), lambda i: (0, 0))),
        scratch_shapes=[pltpu.VMEM((1, chans), jnp.float32),
                        pltpu.VMEM((1, chans), jnp.float32)],
        compiler_params=pltpu.CompilerParams(
            dimension_semantics=("arbitrary",),
            vmem_limit_bytes=vmem_limit),
    )(x, w, b, p, pt)

    # TODO(synk): could alias x to the output (input_output_aliases) when the
    # caller donates `data`; donation is caller-dependent, so left off.
    return pl.pallas_call(
        _norm_kernel,
        out_shape=jax.ShapeDtypeStruct((n_rows, chans), x.dtype),
        grid=(num_tiles,),
        in_specs=[pl.BlockSpec((tile_n, chans), lambda i: (i, 0)),
                  pl.BlockSpec((1, chans), lambda i: (0, 0)),     # resident
                  pl.BlockSpec((1, chans), lambda i: (0, 0))],    # resident
        out_specs=pl.BlockSpec((tile_n, chans), lambda i: (i, 0)),
        compiler_params=pltpu.CompilerParams(
            dimension_semantics=("parallel",),
            vmem_limit_bytes=vmem_limit),
    )(x, scale, shift)


# ---------------------------------------------------------------------------
# Public entry point (single jit over dispatch + kernels + tiny prep).
# ---------------------------------------------------------------------------
@functools.partial(jax.jit, static_argnums=(3,))
def _forward(data, weights, bias, group):
    n_rows, chans = data.shape
    cpg = chans // group
    cfg = _tpu_config()
    w = weights.reshape(1, chans).astype(jnp.float32)
    b = bias.reshape(1, chans).astype(jnp.float32)

    # Lane-dense view for narrow channel counts: (N, C) -> (N*C/128, 128) with
    # the per-channel affine / projector tiled to the 128-lane period.  Free
    # row-major reshape; per-group statistics are unchanged because every lane
    # still maps to its original channel (channel of lane l == l % C).
    use_view = (chans < 128 and 128 % chans == 0
                and (n_rows * chans) % 128 == 0 and n_rows * chans >= 128)
    if use_view:
        reps = 128 // chans
        xv = data.reshape(n_rows * chans // 128, 128)
        wv = jnp.tile(w, (1, reps))
        bv = jnp.tile(b, (1, reps))
        view_c = 128
    else:
        xv, wv, bv, view_c = data, w, b, chans

    p, pt = _group_projector(view_c, chans, group, cpg)
    count = float(n_rows) * float(cpg)

    if n_rows * chans * 4 <= cfg["resident_max_f32_bytes"]:
        out = _forward_resident(xv, wv, bv, p, pt, count,
                                cfg["tile_target_bytes"],
                                cfg["vmem_limit_resident"])
    else:
        out = _forward_two_pass(xv, wv, bv, p, pt, count,
                                cfg["tile_target_bytes"],
                                cfg["vmem_limit_tiled"])
    return out.reshape(n_rows, chans) if use_view else out


def octree_group_norm(data, weights, bias, group, nempty=False):
    """data: (N, C); weights/bias: (1, C) or (C,). Returns (N, C)."""
    del nempty  # does not affect the normalization math (see header)
    assert data.ndim == 2 and data.shape[1] % group == 0
    return _forward(data, weights, bias, group)


# ---------------------------------------------------------------------------
# Pure-JAX reference (direct transcription of the PyTorch forward).
# ---------------------------------------------------------------------------
def _reference(data, weights, bias, group):
    data = data.astype(jnp.float32)
    n, c = data.shape
    cpg = c // group
    inv_count = 1.0 / (float(n) * cpg + EPS)
    mean = jnp.sum(data, axis=0, keepdims=True) * inv_count
    mean = jnp.tile(mean.reshape(1, group, cpg).sum(-1, keepdims=True),
                    (1, 1, cpg)).reshape(1, c)
    out = data - mean
    var = jnp.sum(out * out, axis=0, keepdims=True) * inv_count
    var = jnp.tile(var.reshape(1, group, cpg).sum(-1, keepdims=True),
                   (1, 1, cpg)).reshape(1, c)
    inv_std = 1.0 / jnp.sqrt(var + EPS)
    return (out * inv_std * weights.reshape(1, c).astype(jnp.float32)
            + bias.reshape(1, c).astype(jnp.float32))


if __name__ == "__main__":
    key = jax.random.PRNGKey(0)
    k1, k2, k3, k4 = jax.random.split(key, 4)

    # Case 1: tiny level, narrow channels -> resident path + 128-lane view.
    N1, C1, G1 = 64, 32, 4
    d1 = jax.random.normal(k1, (N1, C1), dtype=jnp.float32)
    w1 = jnp.ones((1, C1), jnp.float32)       # reset_parameters(): ones
    b1 = jnp.zeros((1, C1), jnp.float32)      # reset_parameters(): zeros
    o1 = jax.block_until_ready(octree_group_norm(d1, w1, b1, G1))
    assert o1.shape == (N1, C1)
    assert jnp.allclose(o1, _reference(d1, w1, b1, G1), atol=5e-4, rtol=5e-4), \
        "resident lane-view path mismatch"

    # Case 2: mid-size level -> resident streaming path (multi-tile + tail).
    N2, C2, G2 = 6000, 256, 8
    d2 = jax.random.normal(k2, (N2, C2), dtype=jnp.float32) * 2.0 + 0.5
    w2 = jnp.full((1, C2), 0.5, jnp.float32)
    b2 = jnp.full((1, C2), -0.25, jnp.float32)
    o2 = jax.block_until_ready(octree_group_norm(d2, w2, b2, G2))
    assert o2.shape == (N2, C2)
    assert jnp.allclose(o2, _reference(d2, w2, b2, G2), atol=5e-4, rtol=5e-4), \
        "resident streaming path mismatch"

    # Case 3: bf16 input, narrow C that cannot take the lane view (N*C % 128).
    N3, C3, G3 = 1037, 64, 2
    d3 = (jax.random.normal(k3, (N3, C3), dtype=jnp.float32) * 1.5
          + 0.2).astype(jnp.bfloat16)
    w3 = jnp.full((1, C3), 1.25, jnp.float32)
    b3 = jnp.full((1, C3), 0.1, jnp.float32)
    o3 = jax.block_until_ready(octree_group_norm(d3, w3, b3, G3))
    assert o3.shape == (N3, C3) and o3.dtype == jnp.bfloat16
    r3 = _reference(d3.astype(jnp.float32), w3, b3, G3)
    assert jnp.allclose(o3.astype(jnp.float32), r3, atol=6e-2, rtol=6e-2), \
        "bf16 path mismatch"

    # Case 4: exercise the large-data two-pass pipeline directly with a tiny
    # tile target so the row grid, last-step-only tail masking and the fused
    # scale/shift emission are all covered.
    N4, C4, G4 = 1037, 256, 8
    cpg4 = C4 // G4
    d4 = jax.random.normal(k4, (N4, C4), dtype=jnp.float32) * 3.0 - 1.0
    w4 = jnp.full((1, C4), 0.75, jnp.float32)
    b4 = jnp.full((1, C4), 0.3, jnp.float32)
    p4, pt4 = _group_projector(C4, C4, G4, cpg4)
    o4 = jax.block_until_ready(
        _forward_two_pass(d4, w4, b4, p4, pt4, float(N4) * float(cpg4),
                          tile_target=128 * 1024, vmem_limit=32 * _MIB))
    assert o4.shape == (N4, C4)
    assert jnp.allclose(o4, _reference(d4, w4, b4, G4), atol=5e-4, rtol=5e-4), \
        "two-pass path mismatch"

    print("KERNEL_OK")
</pallas_src>

<mosaic_0001>
module attributes {stable_mosaic.version = 11 : i64} {
  func.func @_resident_kernel(%arg0: i32, %arg1: memref<16x128xf32, #tpu.memory_space<vmem>>, %arg2: memref<1x128xf32, #tpu.memory_space<vmem>>, %arg3: memref<1x128xf32, #tpu.memory_space<vmem>>, %arg4: memref<128x4xf32, #tpu.memory_space<vmem>>, %arg5: memref<4x128xf32, #tpu.memory_space<vmem>>, %arg6: memref<16x128xf32, #tpu.memory_space<vmem>>, %arg7: memref<16x128xf32, #tpu.memory_space<vmem>>, %arg8: memref<1x128xf32, #tpu.memory_space<vmem>>, %arg9: memref<1x128xf32, #tpu.memory_space<vmem>>) attributes {dimension_semantics = [#tpu.dimension_semantics<arbitrary>], iteration_bounds = array<i64: 1>, scalar_prefetch = 0 : i64, scratch_operands = 3 : i64, tpu.core_type = #tpu.core_type<tc>, window_params = [{transform_indices = @transform_0, window_bounds = array<i64: 16, 128>}, {pipeline_mode = #tpu.pipeline_mode<synchronous>, transform_indices = @transform_1, window_bounds = array<i64: 1, 128>}, {pipeline_mode = #tpu.pipeline_mode<synchronous>, transform_indices = @transform_2, window_bounds = array<i64: 1, 128>}, {pipeline_mode = #tpu.pipeline_mode<synchronous>, transform_indices = @transform_3, window_bounds = array<i64: 128, 4>}, {pipeline_mode = #tpu.pipeline_mode<synchronous>, transform_indices = @transform_4, window_bounds = array<i64: 4, 128>}, {pipeline_mode = #tpu.pipeline_mode<synchronous>, transform_indices = @transform_5, window_bounds = array<i64: 16, 128>}]} {
    %c0_i32 = arith.constant 0 : i32
    %0 = arith.cmpi eq, %arg0, %c0_i32 : i32
    %1 = arith.extui %0 : i1 to i32
    %c0_i32_0 = arith.constant 0 : i32
    %2 = arith.cmpi ne, %1, %c0_i32_0 : i32
    scf.if %2 {
      %cst_15 = arith.constant 0.000000e+00 : f32
      %19 = vector.broadcast %cst_15 : f32 to vector<1x128xf32>
      %c0_16 = arith.constant 0 : index
      %c0_17 = arith.constant 0 : index
      %20 = vector.load %arg8[%c0_16, %c0_17] : memref<1x128xf32, #tpu.memory_space<vmem>>, vector<1x128xf32>
      tpu.vector_store %arg8[%c0_16, %c0_17], %19 {strides = array<i32>} : memref<1x128xf32, #tpu.memory_space<vmem>>, vector<1x128xf32>,
      %cst_18 = arith.constant 0.000000e+00 : f32
      %21 = vector.broadcast %cst_18 : f32 to vector<1x128xf32>
      %c0_19 = arith.constant 0 : index
      %c0_20 = arith.constant 0 : index
      %22 = vector.load %arg9[%c0_19, %c0_20] : memref<1x128xf32, #tpu.memory_space<vmem>>, vector<1x128xf32>
      tpu.vector_store %arg9[%c0_19, %c0_20], %21 {strides = array<i32>} : memref<1x128xf32, #tpu.memory_space<vmem>>, vector<1x128xf32>,
    } else {
    }
    %c0 = arith.constant 0 : index
    %c0_1 = arith.constant 0 : index
    %3 = vector.load %arg1[%c0, %c0_1] : memref<16x128xf32, #tpu.memory_space<vmem>>, vector<16x128xf32>
    %c0_2 = arith.constant 0 : index
    %c0_3 = arith.constant 0 : index
    %4 = vector.load %arg7[%c0_2, %c0_3] : memref<16x128xf32, #tpu.memory_space<vmem>>, vector<16x128xf32>
    tpu.vector_store %arg7[%c0_2, %c0_3], %3 {strides = array<i32>} : memref<16x128xf32, #tpu.memory_space<vmem>>, vector<16x128xf32>,
    %c0_4 = arith.constant 0 : index
    %c0_5 = arith.constant 0 : index
    %5 = vector.load %arg8[%c0_4, %c0_5] : memref<1x128xf32, #tpu.memory_space<vmem>>, vector<1x128xf32>
    %cst = arith.constant dense<0.000000e+00> : vector<128xf32>
    %6 = vector.multi_reduction <add>, %3, %cst [0] : vector<16x128xf32> to vector<128xf32>
    %7 = vector.shape_cast %6 : vector<128xf32> to vector<1x128xf32>
    %8 = arith.addf %5, %7 : vector<1x128xf32>
    %c0_6 = arith.constant 0 : index
    %c0_7 = arith.constant 0 : index
    %9 = vector.load %arg8[%c0_6, %c0_7] : memref<1x128xf32, #tpu.memory_space<vmem>>, vector<1x128xf32>
    tpu.vector_store %arg8[%c0_6, %c0_7], %8 {strides = array<i32>} : memref<1x128xf32, #tpu.memory_space<vmem>>, vector<1x128xf32>,
    %c0_8 = arith.constant 0 : index
    %c0_9 = arith.constant 0 : index
    %10 = vector.load %arg9[%c0_8, %c0_9] : memref<1x128xf32, #tpu.memory_space<vmem>>, vector<1x128xf32>
    %11 = arith.mulf %3, %3 : vector<16x128xf32>
    %cst_10 = arith.constant dense<0.000000e+00> : vector<128xf32>
    %12 = vector.multi_reduction <add>, %11, %cst_10 [0] : vector<16x128xf32> to vector<128xf32>
    %13 = vector.shape_cast %12 : vector<128xf32> to vector<1x128xf32>
    %14 = arith.addf %10, %13 : vector<1x128xf32>
    %c0_11 = arith.constant 0 : index
    %c0_12 = arith.constant 0 : index
    %15 = vector.load %arg9[%c0_11, %c0_12] : memref<1x128xf32, #tpu.memory_space<vmem>>, vector<1x128xf32>
    tpu.vector_store %arg9[%c0_11, %c0_12], %14 {strides = array<i32>} : memref<1x128xf32, #tpu.memory_space<vmem>>, vector<1x128xf32>,
    %c0_i32_13 = arith.constant 0 : i32
    %16 = arith.cmpi eq, %arg0, %c0_i32_13 : i32
    %17 = arith.extui %16 : i1 to i32
    %c0_i32_14 = arith.constant 0 : i32
    %18 = arith.cmpi ne, %17, %c0_i32_14 : i32
    scf.if %18 {
      %c0_15 = arith.constant 0 : index
      %c0_16 = arith.constant 0 : index
      %19 = vector.load %arg8[%c0_15, %c0_16] : memref<1x128xf32, #tpu.memory_space<vmem>>, vector<1x128xf32>
      %c0_17 = arith.constant 0 : index
      %c0_18 = arith.constant 0 : index
      %20 = vector.load %arg9[%c0_17, %c0_18] : memref<1x128xf32, #tpu.memory_space<vmem>>, vector<1x128xf32>
      %c0_19 = arith.constant 0 : index
      %c0_20 = arith.constant 0 : index
      %21 = vector.load %arg2[%c0_19, %c0_20] : memref<1x128xf32, #tpu.memory_space<vmem>>, vector<1x128xf32>
      %c0_21 = arith.constant 0 : index
      %c0_22 = arith.constant 0 : index
      %22 = vector.load %arg3[%c0_21, %c0_22] : memref<1x128xf32, #tpu.memory_space<vmem>>, vector<1x128xf32>
      %c0_23 = arith.constant 0 : index
      %c0_24 = arith.constant 0 : index
      %23 = vector.load %arg4[%c0_23, %c0_24] : memref<128x4xf32, #tpu.memory_space<vmem>>, vector<128x4xf32>
      %c0_25 = arith.constant 0 : index
      %c0_26 = arith.constant 0 : index
      %24 = vector.load %arg5[%c0_25, %c0_26] : memref<4x128xf32, #tpu.memory_space<vmem>>, vector<4x128xf32>
      %cst_27 = arith.constant dense<0.000000e+00> : vector<1x4xf32>
      %25 = tpu.matmul %19, %23, %cst_27 {dimension_numbers = #tpu.dot_dimension_numbers<[1], [0], [0], [1], [0, 0, 1, 1], [], []>} : vector<1x128xf32>, vector<128x4xf32>, vector<1x4xf32> -> vector<1x4xf32>
      %cst_28 = arith.constant dense<0.000000e+00> : vector<1x4xf32>
      %26 = tpu.matmul %20, %23, %cst_28 {dimension_numbers = #tpu.dot_dimension_numbers<[1], [0], [0], [1], [0, 0, 1, 1], [], []>} : vector<1x128xf32>, vector<128x4xf32>, vector<1x4xf32> -> vector<1x4xf32>
      %cst_29 = arith.constant 0.001953125 : f32
      %27 = vector.broadcast %cst_29 : f32 to vector<1x4xf32>
      %28 = arith.mulf %25, %27 : vector<1x4xf32>
      %cst_30 = arith.constant 2.000000e+00 : f32
      %29 = vector.broadcast %cst_30 : f32 to vector<1x4xf32>
      %30 = arith.mulf %29, %28 : vector<1x4xf32>
      %31 = arith.mulf %30, %25 : vector<1x4xf32>
      %32 = arith.subf %26, %31 : vector<1x4xf32>
      %cst_31 = arith.constant 5.120000e+02 : f32
      %33 = vector.broadcast %cst_31 : f32 to vector<1x4xf32>
      %34 = arith.mulf %33, %28 : vector<1x4xf32>
      %35 = arith.mulf %34, %28 : vector<1x4xf32>
      %36 = arith.addf %32, %35 : vector<1x4xf32>
      %cst_32 = arith.constant 0.001953125 : f32
      %37 = vector.broadcast %cst_32 : f32 to vector<1x4xf32>
      %38 = arith.mulf %36, %37 : vector<1x4xf32>
      %cst_33 = arith.constant 9.99999974E-6 : f32
      %39 = vector.broadcast %cst_33 : f32 to vector<1x4xf32>
      %40 = arith.addf %38, %39 : vector<1x4xf32>
      %41 = math.rsqrt %40 : vector<1x4xf32>
      %cst_34 = arith.constant dense<0.000000e+00> : vector<1x128xf32>
      %42 = tpu.matmul %41, %24, %cst_34 {dimension_numbers = #tpu.dot_dimension_numbers<[1], [0], [0], [1], [0, 0, 1, 1], [], []>} : vector<1x4xf32>, vector<4x128xf32>, vector<1x128xf32> -> vector<1x128xf32>
      %43 = arith.mulf %42, %21 : vector<1x128xf32>
      %cst_35 = arith.constant dense<0.000000e+00> : vector<1x128xf32>
      %44 = tpu.matmul %28, %24, %cst_35 {dimension_numbers = #tpu.dot_dimension_numbers<[1], [0], [0], [1], [0, 0, 1, 1], [], []>} : vector<1x4xf32>, vector<4x128xf32>, vector<1x128xf32> -> vector<1x128xf32>
      %45 = arith.mulf %44, %43 : vector<1x128xf32>
      %46 = arith.subf %22, %45 : vector<1x128xf32>
      %c0_36 = arith.constant 0 : index
      %c0_37 = arith.constant 0 : index
      %47 = vector.load %arg7[%c0_36, %c0_37] : memref<16x128xf32, #tpu.memory_space<vmem>>, vector<16x128xf32>
      %48 = vector.broadcast %43 : vector<1x128xf32> to vector<16x128xf32>
      %49 = arith.mulf %47, %48 : vector<16x128xf32>
      %50 = vector.broadcast %46 : vector<1x128xf32> to vector<16x128xf32>
      %51 = arith.addf %49, %50 : vector<16x128xf32>
      %c0_38 = arith.constant 0 : index
      %c0_39 = arith.constant 0 : index
      %52 = vector.load %arg6[%c0_38, %c0_39] : memref<16x128xf32, #tpu.memory_space<vmem>>, vector<16x128xf32>
      tpu.vector_store %arg6[%c0_38, %c0_39], %51 {strides = array<i32>} : memref<16x128xf32, #tpu.memory_space<vmem>>, vector<16x128xf32>,
    } else {
    }
    return
  }
  func.func @transform_0(%arg0: i32) -> (i32, i32) {
    %c0_i32 = arith.constant 0 : i32
    %c0_i32_0 = arith.constant 0 : i32
    return %arg0, %c0_i32 : i32, i32
  }
  func.func @transform_1(%arg0: i32) -> (i32, i32) {
    %c0_i32 = arith.constant 0 : i32
    %c0_i32_0 = arith.constant 0 : i32
    %c0_i32_1 = arith.constant 0 : i32
    return %c0_i32, %c0_i32_0 : i32, i32
  }
  func.func @transform_2(%arg0: i32) -> (i32, i32) {
    %c0_i32 = arith.constant 0 : i32
    %c0_i32_0 = arith.constant 0 : i32
    %c0_i32_1 = arith.constant 0 : i32
    return %c0_i32, %c0_i32_0 : i32, i32
  }
  func.func @transform_3(%arg0: i32) -> (i32, i32) {
    %c0_i32 = arith.constant 0 : i32
    %c0_i32_0 = arith.constant 0 : i32
    %c0_i32_1 = arith.constant 0 : i32
    return %c0_i32, %c0_i32_0 : i32, i32
  }
  func.func @transform_4(%arg0: i32) -> (i32, i32) {
    %c0_i32 = arith.constant 0 : i32
    %c0_i32_0 = arith.constant 0 : i32
    %c0_i32_1 = arith.constant 0 : i32
    return %c0_i32, %c0_i32_0 : i32, i32
  }
  func.func @transform_5(%arg0: i32) -> (i32, i32) {
    %c0_i32 = arith.constant 0 : i32
    %c0_i32_0 = arith.constant 0 : i32
    %c0_i32_1 = arith.constant 0 : i32
    return %c0_i32, %c0_i32_0 : i32, i32
  }
}

</mosaic_0001>

<llo_original>
// kernel: _forward.1
$region0: #{_forward.1}
  #allocation0 [shape = 'u32[]', space=smem, size = 0x4, offset = 0x4, fixed_abs, tag = 'smem constant byte address 0x4 - core index']
  #allocation1 [shape = 'u32[144,128]{1,0:T(1,128)}', space=vmem, size = 0x12000, scoped, tag = 'internal scratch']
  #allocation2 [shape = 'f32[16,128]{1,0:T(8,128)}', space=vmem, size = 0x2000, scoped, tag = 'scratch operand']
  #allocation3 [shape = 'f32[1,128]{1,0:T(1,128)}', space=vmem, size = 0x200, scoped, tag = 'scratch operand']
  #allocation4 [shape = 'f32[1,128]{1,0:T(1,128)}', space=vmem, size = 0x200, scoped, tag = 'scratch operand']
  %s0 = inlined_call_operand.vmem [shape: f32[16,128], index: 0, kind: input, shape index: {}]
  %s1 = inlined_call_operand.vmem [shape: f32[1,128], index: 1, kind: input, shape index: {}]
  %s2 = inlined_call_operand.vmem [shape: f32[1,128], index: 2, kind: input, shape index: {}]
  %s3 = inlined_call_operand.vmem [shape: f32[128,4], index: 3, kind: input, shape index: {}]
  %s4 = inlined_call_operand.vmem [shape: f32[4,128], index: 4, kind: input, shape index: {}]
  %s5 = inlined_call_operand.vmem [shape: f32[16,128], index: 5, kind: output, shape index: {}]
  %s6 = sld [smem:[#allocation0]]
  $region38: #{_forward.1} parent=0
    _
  %s8 = ssub.s32 1, %s6
  %s9 = scalar_select 0, %s8, %s6
  // Predicated region
  $region2: #{_forward.1} parent=0 // pred_check
    _
  $region3: #{_forward.1} parent=0 // pred_check_branch
    %11 = sbr.rel (0) target = $region5
  $region4: #{_forward.1} parent=0 // pred_region
    _
  $region5: #{_forward.1} parent=0 // pred_fallthru
    _
  // Predicated region
  $region6: #{_forward.1} parent=0 // pred_check
    _
  $region7: #{_forward.1} parent=0 // pred_check_branch
    %13 = sbr.rel (0) target = $region9
  $region8: #{_forward.1} parent=0 // pred_region
    _
  $region9: #{_forward.1} parent=0 // pred_fallthru
    _
  // Predicated region
  $region10: #{_forward.1} parent=0 // pred_check
    _
  $region11: #{_forward.1} parent=0 // pred_check_branch
    %15 = sbr.rel (0) target = $region13
  $region12: #{_forward.1} parent=0 // pred_region
    _
  $region13: #{_forward.1} parent=0 // pred_fallthru
    _
  // Predicated region
  $region14: #{_forward.1} parent=0 // pred_check
    _
  $region15: #{_forward.1} parent=0 // pred_check_branch
    %17 = sbr.rel (0) target = $region17
  $region16: #{_forward.1} parent=0 // pred_region
    _
  $region17: #{_forward.1} parent=0 // pred_fallthru
    _
  // Predicated region
  $region18: #{_forward.1} parent=0 // pred_check
    _
  $region19: #{_forward.1} parent=0 // pred_check_branch
    %19 = sbr.rel (0) target = $region21
  $region20: #{_forward.1} parent=0 // pred_region
    _
  $region21: #{_forward.1} parent=0 // pred_fallthru
    _
  %p20 = scmp.eq.s32.totalorder 0, 0
  // Predicated region
  $region22: #{_forward.1} parent=0 // pred_check
    %p21 = pneg %p20
  $region23: #{_forward.1} parent=0 // pred_check_branch
    %23 = sbr.rel (%p21) target = $region25
  $region24: #{_forward.1} parent=0 // pred_region
    %24 = vst [vmem:[#allocation3] sm:$0x1] 0.0
    %25 = vst [vmem:[#allocation4] sm:$0x1] 0.0
  $region25: #{_forward.1} parent=0 // pred_fallthru
    _
  %v26 = vld [vmem:[%s0] sm:$0xff]
  %v27 = vld [vmem:[%s0 + $0x8] sm:$0xff]
  %28 = vst [vmem:[#allocation2] sm:$0xff] %v26
  %29 = vst [vmem:[#allocation2 + $0x8] sm:$0xff] %v27
  %v30 = vld [vmem:[#allocation3] sm:$0x1]
  %v31 = vadd.f32 %v26, %v27
  %v32 = vrot.slane %v31, 4
  %v33 = vadd.f32 %v31, %v32
  %v34 = vrot.slane %v33, 2
  %v35 = vadd.f32 %v33, %v34
  %v36 = vrot.slane %v35, 1
  %v37 = vadd.f32 %v35, %v36
  %v38 = vadd.f32 %v30, %v37
  %39 = vst [vmem:[#allocation3] sm:$0x1] %v38
  %v40 = vld [vmem:[#allocation4] sm:$0x1]
  %v41 = vmul.f32 %v26, %v26
  %v42 = vmul.f32 %v27, %v27
  %v43 = vadd.f32 %v41, %v42
  %v44 = vrot.slane %v43, 4
  %v45 = vadd.f32 %v43, %v44
  %v46 = vrot.slane %v45, 2
  %v47 = vadd.f32 %v45, %v46
  %v48 = vrot.slane %v47, 1
  %v49 = vadd.f32 %v47, %v48
  %v50 = vadd.f32 %v40, %v49
  %51 = vst [vmem:[#allocation4] sm:$0x1] %v50
  // Predicated region
  $region26: #{_forward.1} parent=0 // pred_check
    %p52 = pneg %p20
  $region27: #{_forward.1} parent=0 // pred_check_branch
    %54 = sbr.rel (%p52) target = $region29
  $region28: #{_forward.1} parent=0 // pred_region
    %v55 = vld [vmem:[#allocation3] sm:$0x1]
    %v56 = vld [vmem:[#allocation4] sm:$0x1]
    %v57 = vld [vmem:[%s1] sm:$0x1]
    %v58 = vld [vmem:[%s2] sm:$0x1]
    %v59 = vld [vmem:[%s3] sm:$0xff]
    %v60 = vld [vmem:[%s3 + $0x8] sm:$0xff]
    %v61 = vld [vmem:[%s3 + $0x10] sm:$0xff]
    %v62 = vld [vmem:[%s3 + $0x18] sm:$0xff]
    %v63 = vld [vmem:[%s3 + $0x20] sm:$0xff]
    %v64 = vld [vmem:[%s3 + $0x28] sm:$0xff]
    %v65 = vld [vmem:[%s3 + $0x30] sm:$0xff]
    %v66 = vld [vmem:[%s3 + $0x38] sm:$0xff]
    %v67 = vld [vmem:[%s3 + $0x40] sm:$0xff]
    %v68 = vld [vmem:[%s3 + $0x48] sm:$0xff]
    %v69 = vld [vmem:[%s3 + $0x50] sm:$0xff]
    %v70 = vld [vmem:[%s3 + $0x58] sm:$0xff]
    %v71 = vld [vmem:[%s3 + $0x60] sm:$0xff]
    %v72 = vld [vmem:[%s3 + $0x68] sm:$0xff]
    %v73 = vld [vmem:[%s3 + $0x70] sm:$0xff]
    %v74 = vld [vmem:[%s3 + $0x78] sm:$0xff]
    %v75 = vld [vmem:[%s4] sm:$0xf]
    %76 = vmatprep.subr.mxu0 0.0
    %77 = vmatpush1.msra.mxu0 %v74
    %78 = vmatprep.subr.mxu0 0.0
    %79 = vmatpush1.msra.mxu0 %v73
    %80 = vmatprep.subr.mxu0 0.0
    %81 = vmatpush1.msra.mxu0 %v72
    %82 = vmatprep.subr.mxu0 0.0
    %83 = vmatpush1.msra.mxu0 %v71
    %84 = vmatprep.subr.mxu0 0.0
    %85 = vmatpush1.msra.mxu0 %v70
    %86 = vmatprep.subr.mxu0 0.0
    %87 = vmatpush1.msra.mxu0 %v69
    %88 = vmatprep.subr.mxu0 0.0
    %89 = vmatpush1.msra.mxu0 %v68
    %90 = vmatprep.subr.mxu0 0.0
    %91 = vmatpush1.msra.mxu0 %v67
    %92 = vmatprep.subr.mxu0 0.0
    %93 = vmatpush1.msra.mxu0 %v66
    %94 = vmatprep.subr.mxu0 0.0
    %95 = vmatpush1.msra.mxu0 %v65
    %96 = vmatprep.subr.mxu0 0.0
    %97 = vmatpush1.msra.mxu0 %v64
    %98 = vmatprep.subr.mxu0 0.0
    %99 = vmatpush1.msra.mxu0 %v63
    %100 = vmatprep.subr.mxu0 0.0
    %101 = vmatpush1.msra.mxu0 %v62
    %102 = vmatprep.subr.mxu0 0.0
    %103 = vmatpush1.msra.mxu0 %v61
    %104 = vmatprep.subr.mxu0 0.0
    %105 = vmatpush1.msra.mxu0 %v60
    %106 = vmatprep.subr.mxu0 0.0
    %107 = vmatpush1.msra.mxu0 %v59
    %108 = vmatprep.subr.mxu0 0.0
    %109 = vmatpush2.msra.mxu0 0.0
    %110 = vmatprep.subr.mxu0 0.0
    %111 = vmatpush2.msra.mxu0 0.0
    %112 = vmatprep.subr.mxu0 0.0
    %113 = vmatpush2.msra.mxu0 0.0
    %114 = vmatprep.subr.mxu0 0.0
    %115 = vmatpush2.msra.mxu0 0.0
    %116 = vmatprep.subr.mxu0 0.0
    %117 = vmatpush2.msra.mxu0 0.0
    %118 = vmatprep.subr.mxu0 0.0
    %119 = vmatpush2.msra.mxu0 0.0
    %120 = vmatprep.subr.mxu0 0.0
    %121 = vmatpush2.msra.mxu0 0.0
    %122 = vmatprep.subr.mxu0 0.0
    %123 = vmatpush2.msra.mxu0 0.0
    %124 = vmatprep.subr.mxu0 0.0
    %125 = vmatpush2.msra.mxu0 0.0
    %126 = vmatprep.subr.mxu0 0.0
    %127 = vmatpush2.msra.mxu0 0.0
    %128 = vmatprep.subr.mxu0 0.0
    %129 = vmatpush2.msra.mxu0 0.0
    %130 = vmatprep.subr.mxu0 0.0
    %131 = vmatpush2.msra.mxu0 0.0
    %132 = vmatprep.subr.mxu0 0.0
    %133 = vmatpush2.msra.mxu0 0.0
    %134 = vmatprep.subr.mxu0 0.0
    %135 = vmatpush2.msra.mxu0 0.0
    %136 = vmatprep.subr.mxu0 0.0
    %137 = vmatpush2.msra.mxu0 0.0
    %138 = vmatprep.subr.mxu0 0.0
    %139 = vmatpush2.msra.mxu0 0.0
    %140 = vmatprep.mubr.f32.mxu0 0.0
    %141 = vmatmul.mubr.f32.gmra.mxu0 %v55
    %v142 = vpop.f32.mrf.mxu0
    %v143 = vadd.f32 0.0, %v142
    %v144 = vpop.f32.mrf.mxu0
    %145 = vdwg.mxu0
    %146 = vmatprep.subr.mxu0 0.0
    %147 = vmatpush1.msra.mxu0 %v74
    %148 = vmatprep.subr.mxu0 0.0
    %149 = vmatpush1.msra.mxu0 %v73
    %150 = vmatprep.subr.mxu0 0.0
    %151 = vmatpush1.msra.mxu0 %v72
    %152 = vmatprep.subr.mxu0 0.0
    %153 = vmatpush1.msra.mxu0 %v71
    %154 = vmatprep.subr.mxu0 0.0
    %155 = vmatpush1.msra.mxu0 %v70
    %156 = vmatprep.subr.mxu0 0.0
    %157 = vmatpush1.msra.mxu0 %v69
    %158 = vmatprep.subr.mxu0 0.0
    %159 = vmatpush1.msra.mxu0 %v68
    %160 = vmatprep.subr.mxu0 0.0
    %161 = vmatpush1.msra.mxu0 %v67
    %162 = vmatprep.subr.mxu0 0.0
    %163 = vmatpush1.msra.mxu0 %v66
    %164 = vmatprep.subr.mxu0 0.0
    %165 = vmatpush1.msra.mxu0 %v65
    %166 = vmatprep.subr.mxu0 0.0
    %167 = vmatpush1.msra.mxu0 %v64
    %168 = vmatprep.subr.mxu0 0.0
    %169 = vmatpush1.msra.mxu0 %v63
    %170 = vmatprep.subr.mxu0 0.0
    %171 = vmatpush1.msra.mxu0 %v62
    %172 = vmatprep.subr.mxu0 0.0
    %173 = vmatpush1.msra.mxu0 %v61
    %174 = vmatprep.subr.mxu0 0.0
    %175 = vmatpush1.msra.mxu0 %v60
    %176 = vmatprep.subr.mxu0 0.0
    %177 = vmatpush1.msra.mxu0 %v59
    %178 = vmatprep.subr.mxu0 0.0
    %179 = vmatpush2.msra.mxu0 0.0
    %180 = vmatprep.subr.mxu0 0.0
    %181 = vmatpush2.msra.mxu0 0.0
    %182 = vmatprep.subr.mxu0 0.0
    %183 = vmatpush2.msra.mxu0 0.0
    %184 = vmatprep.subr.mxu0 0.0
    %185 = vmatpush2.msra.mxu0 0.0
    %186 = vmatprep.subr.mxu0 0.0
    %187 = vmatpush2.msra.mxu0 0.0
    %188 = vmatprep.subr.mxu0 0.0
    %189 = vmatpush2.msra.mxu0 0.0
    %190 = vmatprep.subr.mxu0 0.0
    %191 = vmatpush2.msra.mxu0 0.0
    %192 = vmatprep.subr.mxu0 0.0
    %193 = vmatpush2.msra.mxu0 0.0
    %194 = vmatprep.subr.mxu0 0.0
    %195 = vmatpush2.msra.mxu0 0.0
    %196 = vmatprep.subr.mxu0 0.0
    %197 = vmatpush2.msra.mxu0 0.0
    %198 = vmatprep.subr.mxu0 0.0
    %199 = vmatpush2.msra.mxu0 0.0
    %200 = vmatprep.subr.mxu0 0.0
    %201 = vmatpush2.msra.mxu0 0.0
    %202 = vmatprep.subr.mxu0 0.0
    %203 = vmatpush2.msra.mxu0 0.0
    %204 = vmatprep.subr.mxu0 0.0
    %205 = vmatpush2.msra.mxu0 0.0
    %206 = vmatprep.subr.mxu0 0.0
    %207 = vmatpush2.msra.mxu0 0.0
    %208 = vmatprep.subr.mxu0 0.0
    %209 = vmatpush2.msra.mxu0 0.0
    %210 = vmatprep.mubr.f32.mxu0 0.0
    %211 = vmatmul.mubr.f32.gmra.mxu0 %v56
    %v212 = vpop.f32.mrf.mxu0
    %v213 = vadd.f32 0.0, %v212
    %v214 = vpop.f32.mrf.mxu0
    %215 = vdwg.mxu0
    %v216 = vmul.f32 %v143, 0.001953125
    %v217 = vmul.f32 %v216, 2.0
    %v218 = vmul.f32 %v217, %v143
    %v219 = vsub.f32 %v213, %v218
    %v220 = vmul.f32 %v216, 512.0
    %v221 = vmul.f32 %v220, %v216
    %v222 = vadd.f32 %v219, %v221
    %v223 = vmul.f32 %v222, 0.001953125
    %v224 = vadd.f32 %v223, 1e-05
    %v225 = vrsqrt.pop %v224
    %vm226 = vcmask 31744
    %v228 = vsel %vm226, %v225, 0
    %vm230 = vcmask 1043456
    %v232 = vsel %vm230, %v75, 0
    %234 = vmatprep.subr.mxu0 0.0
    %235 = vmatpush1.msra.mxu0 0.0
    %236 = vmatprep.subr.mxu0 0.0
    %237 = vmatpush1.msra.mxu0 0.0
    %238 = vmatprep.subr.mxu0 0.0
    %239 = vmatpush1.msra.mxu0 0.0
    %240 = vmatprep.subr.mxu0 0.0
    %241 = vmatpush1.msra.mxu0 0.0
    %242 = vmatprep.subr.mxu0 0.0
    %243 = vmatpush1.msra.mxu0 0.0
    %244 = vmatprep.subr.mxu0 0.0
    %245 = vmatpush1.msra.mxu0 0.0
    %246 = vmatprep.subr.mxu0 0.0
    %247 = vmatpush1.msra.mxu0 0.0
    %248 = vmatprep.subr.mxu0 0.0
    %249 = vmatpush1.msra.mxu0 0.0
    %250 = vmatprep.subr.mxu0 0.0
    %251 = vmatpush1.msra.mxu0 0.0
    %252 = vmatprep.subr.mxu0 0.0
    %253 = vmatpush1.msra.mxu0 0.0
    %254 = vmatprep.subr.mxu0 0.0
    %255 = vmatpush1.msra.mxu0 0.0
    %256 = vmatprep.subr.mxu0 0.0
    %257 = vmatpush1.msra.mxu0 0.0
    %258 = vmatprep.subr.mxu0 0.0
    %259 = vmatpush1.msra.mxu0 0.0
    %260 = vmatprep.subr.mxu0 0.0
    %261 = vmatpush1.msra.mxu0 0.0
    %262 = vmatprep.subr.mxu0 0.0
    %263 = vmatpush1.msra.mxu0 0.0
    %264 = vmatprep.subr.mxu0 0.0
    %265 = vmatpush1.msra.mxu0 %v232
    %266 = vmatprep.subr.mxu0 0.0
    %267 = vmatpush2.msra.mxu0 0.0
    %268 = vmatprep.subr.mxu0 0.0
    %269 = vmatpush2.msra.mxu0 0.0
    %270 = vmatprep.subr.mxu0 0.0
    %271 = vmatpush2.msra.mxu0 0.0
    %272 = vmatprep.subr.mxu0 0.0
    %273 = vmatpush2.msra.mxu0 0.0
    %274 = vmatprep.subr.mxu0 0.0
    %275 = vmatpush2.msra.mxu0 0.0
    %276 = vmatprep.subr.mxu0 0.0
    %277 = vmatpush2.msra.mxu0 0.0
    %278 = vmatprep.subr.mxu0 0.0
    %279 = vmatpush2.msra.mxu0 0.0
    %280 = vmatprep.subr.mxu0 0.0
    %281 = vmatpush2.msra.mxu0 0.0
    %282 = vmatprep.subr.mxu0 0.0
    %283 = vmatpush2.msra.mxu0 0.0
    %284 = vmatprep.subr.mxu0 0.0
    %285 = vmatpush2.msra.mxu0 0.0
    %286 = vmatprep.subr.mxu0 0.0
    %287 = vmatpush2.msra.mxu0 0.0
    %288 = vmatprep.subr.mxu0 0.0
    %289 = vmatpush2.msra.mxu0 0.0
    %290 = vmatprep.subr.mxu0 0.0
    %291 = vmatpush2.msra.mxu0 0.0
    %292 = vmatprep.subr.mxu0 0.0
    %293 = vmatpush2.msra.mxu0 0.0
    %294 = vmatprep.subr.mxu0 0.0
    %295 = vmatpush2.msra.mxu0 0.0
    %296 = vmatprep.subr.mxu0 0.0
    %297 = vmatpush2.msra.mxu0 0.0
    %298 = vmatprep.mubr.f32.mxu0 0.0
    %299 = vmatmul.mubr.f32.gmra.mxu0 %v228
    %v300 = vpop.f32.mrf.mxu0
    %v301 = vadd.f32 0.0, %v300
    %v302 = vpop.f32.mrf.mxu0
    %303 = vdwg.mxu0
    %v304 = vmul.f32 %v301, %v57
    %v306 = vsel %vm226, %v216, 0
    %308 = vmatprep.subr.mxu0 0.0
    %309 = vmatpush1.msra.mxu0 0.0
    %310 = vmatprep.subr.mxu0 0.0
    %311 = vmatpush1.msra.mxu0 0.0
    %312 = vmatprep.subr.mxu0 0.0
    %313 = vmatpush1.msra.mxu0 0.0
    %314 = vmatprep.subr.mxu0 0.0
    %315 = vmatpush1.msra.mxu0 0.0
    %316 = vmatprep.subr.mxu0 0.0
    %317 = vmatpush1.msra.mxu0 0.0
    %318 = vmatprep.subr.mxu0 0.0
    %319 = vmatpush1.msra.mxu0 0.0
    %320 = vmatprep.subr.mxu0 0.0
    %321 = vmatpush1.msra.mxu0 0.0
    %322 = vmatprep.subr.mxu0 0.0
    %323 = vmatpush1.msra.mxu0 0.0
    %324 = vmatprep.subr.mxu0 0.0
    %325 = vmatpush1.msra.mxu0 0.0
    %326 = vmatprep.subr.mxu0 0.0
    %327 = vmatpush1.msra.mxu0 0.0
    %328 = vmatprep.subr.mxu0 0.0
    %329 = vmatpush1.msra.mxu0 0.0
    %330 = vmatprep.subr.mxu0 0.0
    %331 = vmatpush1.msra.mxu0 0.0
    %332 = vmatprep.subr.mxu0 0.0
    %333 = vmatpush1.msra.mxu0 0.0
    %334 = vmatprep.subr.mxu0 0.0
    %335 = vmatpush1.msra.mxu0 0.0
    %336 = vmatprep.subr.mxu0 0.0
    %337 = vmatpush1.msra.mxu0 0.0
    %338 = vmatprep.subr.mxu0 0.0
    %339 = vmatpush1.msra.mxu0 %v232
    %340 = vmatprep.subr.mxu0 0.0
    %341 = vmatpush2.msra.mxu0 0.0
    %342 = vmatprep.subr.mxu0 0.0
    %343 = vmatpush2.msra.mxu0 0.0
    %344 = vmatprep.subr.mxu0 0.0
    %345 = vmatpush2.msra.mxu0 0.0
    %346 = vmatprep.subr.mxu0 0.0
    %347 = vmatpush2.msra.mxu0 0.0
    %348 = vmatprep.subr.mxu0 0.0
    %349 = vmatpush2.msra.mxu0 0.0
    %350 = vmatprep.subr.mxu0 0.0
    %351 = vmatpush2.msra.mxu0 0.0
    %352 = vmatprep.subr.mxu0 0.0
    %353 = vmatpush2.msra.mxu0 0.0
    %354 = vmatprep.subr.mxu0 0.0
    %355 = vmatpush2.msra.mxu0 0.0
    %356 = vmatprep.subr.mxu0 0.0
    %357 = vmatpush2.msra.mxu0 0.0
    %358 = vmatprep.subr.mxu0 0.0
    %359 = vmatpush2.msra.mxu0 0.0
    %360 = vmatprep.subr.mxu0 0.0
    %361 = vmatpush2.msra.mxu0 0.0
    %362 = vmatprep.subr.mxu0 0.0
    %363 = vmatpush2.msra.mxu0 0.0
    %364 = vmatprep.subr.mxu0 0.0
    %365 = vmatpush2.msra.mxu0 0.0
    %366 = vmatprep.subr.mxu0 0.0
    %367 = vmatpush2.msra.mxu0 0.0
    %368 = vmatprep.subr.mxu0 0.0
    %369 = vmatpush2.msra.mxu0 0.0
    %370 = vmatprep.subr.mxu0 0.0
    %371 = vmatpush2.msra.mxu0 0.0
    %372 = vmatprep.mubr.f32.mxu0 0.0
    %373 = vmatmul.mubr.f32.gmra.mxu0 %v306
    %v374 = vpop.f32.mrf.mxu0
    %v375 = vadd.f32 0.0, %v374
    %v376 = vpop.f32.mrf.mxu0
    %377 = vdwg.mxu0
    %v378 = vmul.f32 %v375, %v304
    %v379 = vsub.f32 %v58, %v378
    %v380 = vld [vmem:[#allocation2] sm:$0xff]
    %v381 = vld [vmem:[#allocation2 + $0x8] sm:$0xff]
    %v382 = vlaneseq
    %v383 = vshrl.u32 %v382, 7
    %v384 = vsub.s32 0, %v383
    %v385 = vrot.slane %v304, %v384
    %v386 = vmul.f32 %v380, %v385
    %v387 = vmul.f32 %v381, %v385
    %v389 = vlaneseq
    %v390 = vshrl.u32 %v389, 7
    %v391 = vsub.s32 0, %v390
    %v392 = vrot.slane %v379, %v391
    %v394 = vadd.f32 %v386, %v392
    %v395 = vadd.f32 %v387, %v392
    %396 = vst [vmem:[%s5] sm:$0xff] %v394
    %397 = vst [vmem:[%s5 + $0x8] sm:$0xff] %v395
  $region29: #{_forward.1} parent=0 // pred_fallthru
    _
  // Predicated region
  $region30: #{_forward.1} parent=0 // pred_check
    _
  $region31: #{_forward.1} parent=0 // pred_check_branch
    %399 = sbr.rel (0) target = $region33
  $region32: #{_forward.1} parent=0 // pred_region
    _
  $region33: #{_forward.1} parent=0 // pred_fallthru
    _
  // Predicated region
  $region34: #{_forward.1} parent=0 // pred_check
    _
  $region35: #{_forward.1} parent=0 // pred_check_branch
    %401 = sbr.rel (0) target = $region37
  $region36: #{_forward.1} parent=0 // pred_region
    _
  $region37: #{_forward.1} parent=0 // pred_fallthru
    _

</llo_original>
